<compile_context>
chip_gen: v6e
topology: v6e:2x2x1
jax: 0.10.0
libtpu: 0.0.40
codegen_flags: <defaults>
</compile_context>

<pallas_src>
import functools
import math

import jax
import jax.numpy as jnp
from jax.experimental import pallas as pl
from jax.experimental.pallas import tpu as pltpu


def _softmax_last(x):
    m = jnp.max(x, axis=-1, keepdims=True)
    e = jnp.exp(x - m)
    return e / jnp.sum(e, axis=-1, keepdims=True)


def sdpa_kernel(qr_ref, qp_ref, kcat_ref, vcat_ref, out_ref, attn_ref, *,
                scale, continue_complex):
    tq = qr_ref.shape[0]
    d = qr_ref.shape[1]
    lk = vcat_ref.shape[0]

    # Stack real/phase queries along the row (sublane) axis so the whole
    # Q.K^T stage is a single MXU matmul: (2*tq, d) x (2*lk, d)^T.
    q_cat = jnp.concatenate([qr_ref[...], qp_ref[...]], axis=0)

    s = jax.lax.dot_general(
        q_cat, kcat_ref[...],
        dimension_numbers=(((1,), (1,)), ((), ())),
        preferred_element_type=jnp.float32)            # (2*tq, 2*lk)

    # Quadrants: [ q_r.k_r^T  q_r.k_p^T ;  q_p.k_r^T  q_p.k_p^T ]
    attn_real = s[:tq, :lk] - s[tq:, lk:]
    attn_phase = s[:tq, lk:] + s[tq:, :lk]

    if continue_complex:
        # Row-wise softmax on the stacked [attn_real; attn_phase] logits.
        logits = jnp.concatenate([attn_real, attn_phase], axis=0) / scale
        p = _softmax_last(logits)                      # (2*tq, lk), f32

        # Single matmul against [v_real | v_phase]:
        #   C = [ p_r @ v_r  p_r @ v_p ;  p_p @ v_r  p_p @ v_p ]
        c = jnp.dot(p.astype(vcat_ref.dtype), vcat_ref[...],
                    preferred_element_type=jnp.float32)  # (2*tq, 2*d)
        x_real = c[:tq, :d] - c[tq:, d:]
        x_phase = c[:tq, d:] + c[tq:, :d]

        out_ref[...] = jnp.concatenate([x_real, x_phase],
                                       axis=-1).astype(out_ref.dtype)
        attn_ref[...] = p[:tq].astype(attn_ref.dtype)   # post-softmax attn_real
    else:
        mag = jnp.sqrt(attn_real * attn_real + attn_phase * attn_phase) / scale
        p = _softmax_last(mag)                          # (tq, lk)
        # One matmul: p @ [v_real | v_phase] == [x_real | x_phase].
        out = jnp.dot(p.astype(vcat_ref.dtype), vcat_ref[...],
                      preferred_element_type=jnp.float32)
        out_ref[...] = out.astype(out_ref.dtype)
        attn_ref[...] = attn_real.astype(attn_ref.dtype)  # raw pre-scale attn_real


def scaled_dot_product_attention(x_real, x_phase, *, scale, continue_complex,
                                 mask=None, tile_q=256):
    """x_real / x_phase: tuples (q, k, v), each of shape [batch, n_head, len, d_k]."""
    assert mask is None  # TODO(synk): mask not supported in this kernel.
    q_real, k_real, v_real = x_real
    q_phase, k_phase, v_phase = x_phase

    B, H, Lq, D = q_real.shape
    Lk = k_real.shape[2]
    BH = B * H

    tile_q = min(tile_q, Lq)
    if Lq % tile_q != 0:
        tile_q = Lq          # fall back to one q-tile per (batch, head)

    def flat(x):
        return x.reshape(BH, x.shape[2], x.shape[3])

    qr, qp = flat(q_real), flat(q_phase)
    # Fuse real/phase K along rows and V along lanes outside the kernel so each
    # kernel stage is a single MXU matmul and the output store is lane-dense.
    kcat = jnp.concatenate([flat(k_real), flat(k_phase)], axis=1)   # (BH, 2*Lk, D)
    vcat = jnp.concatenate([flat(v_real), flat(v_phase)], axis=2)   # (BH, Lk, 2*D)

    grid = (BH, Lq // tile_q)

    q_spec = pl.BlockSpec((None, tile_q, D), lambda b, i: (b, i, 0))
    k_spec = pl.BlockSpec((None, 2 * Lk, D), lambda b, i: (b, 0, 0))
    v_spec = pl.BlockSpec((None, Lk, 2 * D), lambda b, i: (b, 0, 0))
    o_spec = pl.BlockSpec((None, tile_q, 2 * D), lambda b, i: (b, i, 0))
    a_spec = pl.BlockSpec((None, tile_q, Lk), lambda b, i: (b, i, 0))

    kernel = functools.partial(sdpa_kernel, scale=float(scale),
                               continue_complex=bool(continue_complex))

    out, attn = pl.pallas_call(
        kernel,
        out_shape=(jax.ShapeDtypeStruct((BH, Lq, 2 * D), q_real.dtype),
                   jax.ShapeDtypeStruct((BH, Lq, Lk), q_real.dtype)),
        grid_spec=pltpu.PrefetchScalarGridSpec(
            num_scalar_prefetch=0,
            grid=grid,
            in_specs=[q_spec, q_spec, k_spec, v_spec],
            out_specs=[o_spec, a_spec],
        ),
        compiler_params=pltpu.CompilerParams(
            dimension_semantics=("parallel", "parallel"),
            vmem_limit_bytes=64 * 1024 * 1024),
    )(qr, qp, kcat, vcat)

    out = out.reshape(B, H, Lq, 2 * D)
    out_real = out[..., :D]
    out_phase = out[..., D:]
    attn_real = attn.reshape(B, H, Lq, Lk)
    return out_real, out_phase, attn_real


def reference_sdpa(x_real, x_phase, scale, continue_complex):
    """Pure-JAX mirror of the PyTorch module (mask=None, eval mode)."""
    q_real, k_real, v_real = x_real
    q_phase, k_phase, v_phase = x_phase
    kT = lambda k: jnp.swapaxes(k, 2, 3)
    attn_real = q_real @ kT(k_real) - q_phase @ kT(k_phase)
    attn_phase = q_real @ kT(k_phase) + q_phase @ kT(k_real)
    if continue_complex:
        a_r = jax.nn.softmax(attn_real / scale, axis=-1)
        a_p = jax.nn.softmax(attn_phase / scale, axis=-1)
        out_real = a_r @ v_real - a_p @ v_phase
        out_phase = a_r @ v_phase + a_p @ v_real
        return out_real, out_phase, a_r
    else:
        attn = jnp.sqrt(attn_real * attn_real + attn_phase * attn_phase) / scale
        attn = jax.nn.softmax(attn, axis=-1)
        return attn @ v_real, attn @ v_phase, attn_real


if __name__ == "__main__":
    key = jax.random.PRNGKey(0)
    ks = jax.random.split(key, 6)

    batch, n_head, seq, d_k = 2, 2, 8, 16
    d_model = n_head * d_k
    scale = math.sqrt(d_model)

    shp = (batch, n_head, seq, d_k)
    q_r, k_r, v_r, q_p, k_p, v_p = (jax.random.normal(k, shp, dtype=jnp.float32)
                                    for k in ks)

    for continue_complex in (True, False):
        out_r, out_p, attn_r = scaled_dot_product_attention(
            (q_r, k_r, v_r), (q_p, k_p, v_p),
            scale=scale, continue_complex=continue_complex)
        jax.block_until_ready((out_r, out_p, attn_r))

        with jax.default_matmul_precision("highest"):
            ref_r, ref_p, ref_a = reference_sdpa(
                (q_r, k_r, v_r), (q_p, k_p, v_p), scale, continue_complex)

        assert jnp.allclose(out_r, ref_r, atol=2e-3, rtol=2e-3), "out_real mismatch"
        assert jnp.allclose(out_p, ref_p, atol=2e-3, rtol=2e-3), "out_phase mismatch"
        assert jnp.allclose(attn_r, ref_a, atol=2e-3, rtol=2e-3), "attn_real mismatch"

    print("KERNEL_OK")
</pallas_src>

<mosaic_0001>
module attributes {stable_mosaic.version = 11 : i64} {
  func.func @sdpa_kernel(%arg0: i32, %arg1: i32, %arg2: memref<1x8x16xf32, #tpu.memory_space<vmem>>, %arg3: memref<1x8x16xf32, #tpu.memory_space<vmem>>, %arg4: memref<1x16x16xf32, #tpu.memory_space<vmem>>, %arg5: memref<1x8x32xf32, #tpu.memory_space<vmem>>, %arg6: memref<1x8x32xf32, #tpu.memory_space<vmem>>, %arg7: memref<1x8x8xf32, #tpu.memory_space<vmem>>) attributes {dimension_semantics = [#tpu.dimension_semantics<parallel>, #tpu.dimension_semantics<parallel>], iteration_bounds = array<i64: 4, 1>, scalar_prefetch = 0 : i64, scratch_operands = 0 : i64, tpu.core_type = #tpu.core_type<tc>, window_params = [{transform_indices = @transform_0, window_bounds = array<i64: 1, 8, 16>}, {transform_indices = @transform_1, window_bounds = array<i64: 1, 8, 16>}, {transform_indices = @transform_2, window_bounds = array<i64: 1, 16, 16>}, {transform_indices = @transform_3, window_bounds = array<i64: 1, 8, 32>}, {transform_indices = @transform_4, window_bounds = array<i64: 1, 8, 32>}, {transform_indices = @transform_5, window_bounds = array<i64: 1, 8, 8>}]} {
    %c0 = arith.constant 0 : index
    %c0_0 = arith.constant 0 : index
    %c0_1 = arith.constant 0 : index
    %0 = vector.load %arg2[%c0, %c0_0, %c0_1] : memref<1x8x16xf32, #tpu.memory_space<vmem>>, vector<1x8x16xf32>
    %1 = vector.shape_cast %0 : vector<1x8x16xf32> to vector<8x16xf32>
    %c0_2 = arith.constant 0 : index
    %c0_3 = arith.constant 0 : index
    %c0_4 = arith.constant 0 : index
    %2 = vector.load %arg3[%c0_2, %c0_3, %c0_4] : memref<1x8x16xf32, #tpu.memory_space<vmem>>, vector<1x8x16xf32>
    %3 = vector.shape_cast %2 : vector<1x8x16xf32> to vector<8x16xf32>
    %4 = tpu.concatenate %1, %3 in 0 : vector<8x16xf32>, vector<8x16xf32> -> vector<16x16xf32>
    %c0_5 = arith.constant 0 : index
    %c0_6 = arith.constant 0 : index
    %c0_7 = arith.constant 0 : index
    %5 = vector.load %arg4[%c0_5, %c0_6, %c0_7] : memref<1x16x16xf32, #tpu.memory_space<vmem>>, vector<1x16x16xf32>
    %6 = vector.shape_cast %5 : vector<1x16x16xf32> to vector<16x16xf32>
    %cst = arith.constant dense<0.000000e+00> : vector<16x16xf32>
    %7 = tpu.matmul %4, %6, %cst {dimension_numbers = #tpu.dot_dimension_numbers<[1], [1], [0], [0], [0, 0, 1, 0], [], []>} : vector<16x16xf32>, vector<16x16xf32>, vector<16x16xf32> -> vector<16x16xf32>
    %8 = vector.extract_strided_slice %7 {offsets = [0, 0], sizes = [8, 8], strides = [1, 1]} : vector<16x16xf32> to vector<8x8xf32>
    %9 = vector.extract_strided_slice %7 {offsets = [8, 8], sizes = [8, 8], strides = [1, 1]} : vector<16x16xf32> to vector<8x8xf32>
    %10 = arith.subf %8, %9 : vector<8x8xf32>
    %11 = vector.extract_strided_slice %7 {offsets = [0, 8], sizes = [8, 8], strides = [1, 1]} : vector<16x16xf32> to vector<8x8xf32>
    %12 = vector.extract_strided_slice %7 {offsets = [8, 0], sizes = [8, 8], strides = [1, 1]} : vector<16x16xf32> to vector<8x8xf32>
    %13 = arith.addf %11, %12 : vector<8x8xf32>
    %14 = tpu.concatenate %10, %13 in 0 : vector<8x8xf32>, vector<8x8xf32> -> vector<16x8xf32>
    %cst_8 = arith.constant 5.65685415 : f32
    %15 = vector.broadcast %cst_8 : f32 to vector<16x8xf32>
    %16 = arith.divf %14, %15 : vector<16x8xf32>
    %cst_9 = arith.constant dense<0xFF800000> : vector<16xf32>
    %17 = vector.multi_reduction <maximumf>, %16, %cst_9 [1] : vector<16x8xf32> to vector<16xf32>
    %18 = vector.shape_cast %17 : vector<16xf32> to vector<16x1xf32>
    %19 = vector.broadcast %18 : vector<16x1xf32> to vector<16x8xf32>
    %20 = arith.subf %16, %19 : vector<16x8xf32>
    %21 = math.exp %20 : vector<16x8xf32>
    %cst_10 = arith.constant dense<0.000000e+00> : vector<16xf32>
    %22 = vector.multi_reduction <add>, %21, %cst_10 [1] : vector<16x8xf32> to vector<16xf32>
    %23 = vector.shape_cast %22 : vector<16xf32> to vector<16x1xf32>
    %24 = vector.broadcast %23 : vector<16x1xf32> to vector<16x8xf32>
    %25 = arith.divf %21, %24 : vector<16x8xf32>
    %c0_11 = arith.constant 0 : index
    %c0_12 = arith.constant 0 : index
    %c0_13 = arith.constant 0 : index
    %26 = vector.load %arg5[%c0_11, %c0_12, %c0_13] : memref<1x8x32xf32, #tpu.memory_space<vmem>>, vector<1x8x32xf32>
    %27 = vector.shape_cast %26 : vector<1x8x32xf32> to vector<8x32xf32>
    %cst_14 = arith.constant dense<0.000000e+00> : vector<16x32xf32>
    %28 = tpu.matmul %25, %27, %cst_14 {dimension_numbers = #tpu.dot_dimension_numbers<[1], [0], [0], [1], [0, 0, 1, 1], [], []>} : vector<16x8xf32>, vector<8x32xf32>, vector<16x32xf32> -> vector<16x32xf32>
    %29 = vector.extract_strided_slice %28 {offsets = [0, 0], sizes = [8, 16], strides = [1, 1]} : vector<16x32xf32> to vector<8x16xf32>
    %30 = vector.extract_strided_slice %28 {offsets = [8, 16], sizes = [8, 16], strides = [1, 1]} : vector<16x32xf32> to vector<8x16xf32>
    %31 = arith.subf %29, %30 : vector<8x16xf32>
    %32 = vector.extract_strided_slice %28 {offsets = [0, 16], sizes = [8, 16], strides = [1, 1]} : vector<16x32xf32> to vector<8x16xf32>
    %33 = vector.extract_strided_slice %28 {offsets = [8, 0], sizes = [8, 16], strides = [1, 1]} : vector<16x32xf32> to vector<8x16xf32>
    %34 = arith.addf %32, %33 : vector<8x16xf32>
    %35 = tpu.concatenate %31, %34 in 1 : vector<8x16xf32>, vector<8x16xf32> -> vector<8x32xf32>
    %c0_15 = arith.constant 0 : index
    %c0_16 = arith.constant 0 : index
    %c0_17 = arith.constant 0 : index
    %36 = vector.load %arg6[%c0_15, %c0_16, %c0_17] : memref<1x8x32xf32, #tpu.memory_space<vmem>>, vector<1x8x32xf32>
    %37 = vector.shape_cast %36 : vector<1x8x32xf32> to vector<8x32xf32>
    %38 = vector.shape_cast %35 : vector<8x32xf32> to vector<1x8x32xf32>
    tpu.vector_store %arg6[%c0_15, %c0_16, %c0_17], %38 {strides = array<i32>} : memref<1x8x32xf32, #tpu.memory_space<vmem>>, vector<1x8x32xf32>,
    %39 = vector.extract_strided_slice %25 {offsets = [0, 0], sizes = [8, 8], strides = [1, 1]} : vector<16x8xf32> to vector<8x8xf32>
    %c0_18 = arith.constant 0 : index
    %c0_19 = arith.constant 0 : index
    %c0_20 = arith.constant 0 : index
    %40 = vector.load %arg7[%c0_18, %c0_19, %c0_20] : memref<1x8x8xf32, #tpu.memory_space<vmem>>, vector<1x8x8xf32>
    %41 = vector.shape_cast %40 : vector<1x8x8xf32> to vector<8x8xf32>
    %42 = vector.shape_cast %39 : vector<8x8xf32> to vector<1x8x8xf32>
    tpu.vector_store %arg7[%c0_18, %c0_19, %c0_20], %42 {strides = array<i32>} : memref<1x8x8xf32, #tpu.memory_space<vmem>>, vector<1x8x8xf32>,
    return
  }
  func.func @transform_0(%arg0: i32, %arg1: i32) -> (i32, i32, i32) {
    %c0_i32 = arith.constant 0 : i32
    %c0_i32_0 = arith.constant 0 : i32
    return %arg0, %arg1, %c0_i32 : i32, i32, i32
  }
  func.func @transform_1(%arg0: i32, %arg1: i32) -> (i32, i32, i32) {
    %c0_i32 = arith.constant 0 : i32
    %c0_i32_0 = arith.constant 0 : i32
    return %arg0, %arg1, %c0_i32 : i32, i32, i32
  }
  func.func @transform_2(%arg0: i32, %arg1: i32) -> (i32, i32, i32) {
    %c0_i32 = arith.constant 0 : i32
    %c0_i32_0 = arith.constant 0 : i32
    %c0_i32_1 = arith.constant 0 : i32
    return %arg0, %c0_i32, %c0_i32_0 : i32, i32, i32
  }
  func.func @transform_3(%arg0: i32, %arg1: i32) -> (i32, i32, i32) {
    %c0_i32 = arith.constant 0 : i32
    %c0_i32_0 = arith.constant 0 : i32
    %c0_i32_1 = arith.constant 0 : i32
    return %arg0, %c0_i32, %c0_i32_0 : i32, i32, i32
  }
  func.func @transform_4(%arg0: i32, %arg1: i32) -> (i32, i32, i32) {
    %c0_i32 = arith.constant 0 : i32
    %c0_i32_0 = arith.constant 0 : i32
    return %arg0, %arg1, %c0_i32 : i32, i32, i32
  }
  func.func @transform_5(%arg0: i32, %arg1: i32) -> (i32, i32, i32) {
    %c0_i32 = arith.constant 0 : i32
    %c0_i32_0 = arith.constant 0 : i32
    return %arg0, %arg1, %c0_i32 : i32, i32, i32
  }
}

</mosaic_0001>

<llo_original>
// kernel: tpu_custom_call.1
$region0: #{tpu_custom_call.1}
  #allocation0 [shape = 'u32[]', space=smem, size = 0x4, offset = 0x4, fixed_abs, tag = 'smem constant byte address 0x4 - core index']
  #allocation1 [shape = 'u32[144,128]{1,0:T(1,128)}', space=vmem, size = 0x12000, scoped, tag = 'internal scratch']
  %s0 = inlined_call_operand.hbm [shape: f32[4,8,16], index: 0, kind: input, shape index: {}]
  %s1 = inlined_call_operand.hbm [shape: f32[4,8,16], index: 1, kind: input, shape index: {}]
  %s2 = inlined_call_operand.hbm [shape: f32[4,16,16], index: 2, kind: input, shape index: {}]
  %s3 = inlined_call_operand.hbm [shape: f32[4,8,32], index: 3, kind: input, shape index: {}]
  %s4 = inlined_call_operand.hbm [shape: f32[4,8,32], index: 4, kind: output, shape index: {0}]
  %s5 = inlined_call_operand.hbm [shape: f32[4,8,8], index: 5, kind: output, shape index: {1}]
  %6 = xla_tuple %s4, %s5
  %s7 = sld [smem:[#allocation0]]
  $region73: #{tpu_custom_call.1} parent=0
    _
  %s9 = ssub.s32 1, %s7
  %s10 = scalar_select 0, %s9, %s7
  $region1: #{tpu_custom_call.1} parent=0
    #allocation2 [shape = 'u8[8192]{0}', space=vmem, size = 0x2000, scoped, tag = 'input window, operand 0']
    #allocation3 [shape = 's32[2]{0}', space=sflag, size = 0x8, scoped, tag = 'scoped memory for tpu_custom_call.1']
    #allocation4 [shape = 's32[2]{0}', space=sflag, size = 0x8, scoped, tag = 'scoped memory for tpu_custom_call.1']
    #allocation5 [shape = 'u8[8192]{0}', space=vmem, size = 0x2000, scoped, tag = 'input window, operand 1']
    #allocation6 [shape = 's32[2]{0}', space=sflag, size = 0x8, scoped, tag = 'scoped memory for tpu_custom_call.1']
    #allocation7 [shape = 'u8[16384]{0}', space=vmem, size = 0x4000, scoped, tag = 'input window, operand 2']
    #allocation8 [shape = 'u8[8192]{0}', space=vmem, size = 0x2000, scoped, tag = 'input window, operand 3']
    #allocation9 [shape = 's32[2]{0}', space=sflag, size = 0x8, scoped, tag = 'scoped memory for tpu_custom_call.1']
    #allocation10 [shape = 'u8[8192]{0}', space=vmem, size = 0x2000, scoped, tag = 'output window, operand 0']
    #allocation11 [shape = 'u8[8192]{0}', space=vmem, size = 0x2000, scoped, tag = 'output window, operand 1']
    #allocation12 [shape = 's32[2]{0}', space=sflag, size = 0x8, scoped, tag = 'scoped memory for tpu_custom_call.1']
    %11 = vsyncpa [#allocation3], 0
    %s12 = scalar_lea.sflag [#allocation3], 1
    %13 = vsyncpa %s12, 0
    %14 = vsyncpa [#allocation6], 0
    %s15 = scalar_lea.sflag [#allocation6], 1
    %16 = vsyncpa %s15, 0
    %17 = vsyncpa [#allocation9], 0
    %s18 = scalar_lea.sflag [#allocation9], 1
    %19 = vsyncpa %s18, 0
    %20 = vsyncpa [#allocation4], 0
    %s21 = scalar_lea.sflag [#allocation4], 1
    %22 = vsyncpa %s21, 0
    %23 = vsyncpa [#allocation12], 0
    %s24 = scalar_lea.sflag [#allocation12], 1
    %25 = vsyncpa %s24, 0
    loop: start=0, step=1, limit=6
    $region2: #{tpu_custom_call.1} parent=1 // loop_pre_header
      _
    $region3: #{tpu_custom_call.1} parent=1 // loop_header
      %s27 = sphi 0, %s31
      %p28 = scmp.ge.s32.totalorder %s27, 6
      %s34 = sphi 0, %s46
      %s35 = sphi 0, %s42
      %s36 = sphi 0, %s34
      %s37 = sphi 0, %s35
      %s38 = sphi 0, %s36
      %s39 = sphi 0, %s37
      %s51 = sphi 0, %s53
      %s54 = sphi 0, %s51
      %s55 = sphi 0, %s54
      %s71 = sphi 0, %s55
      %s79 = sphi 0, %s81
      %s82 = sphi 0, %s79
      %s83 = sphi 0, %s82
      %s99 = sphi 0, %s83
      %s105 = sphi 0, %s107
      %s108 = sphi 0, %s105
      %s109 = sphi 0, %s108
      %s125 = sphi 0, %s109
      %s131 = sphi 0, %s133
      %s134 = sphi 0, %s131
      %s135 = sphi 0, %s134
      %s151 = sphi 0, %s135
      %s159 = sphi 0, %s161
      %s162 = sphi 0, %s159
      %s163 = sphi 0, %s162
      %s179 = sphi 0, %s163
      %s187 = sphi 0, %s189
      %s190 = sphi 0, %s187
      %s191 = sphi 0, %s190
      %s207 = sphi 0, %s191
    $region4: #{tpu_custom_call.1} parent=1 // loop_header_branch
      %30 = sbr.rel (%p28) target = $region8
    $region5: #{tpu_custom_call.1} parent=1 // loop_body
      %s32 = ssub.s32 %s27, 1
      %s33 = ssub.s32 %s27, 2
      %s40 = sadd.s32 1, %s35
      %p41 = scmp.ge.s32.totalorder %s40, 1
      %s42 = scalar_select %p41, 0, %s40
      %s43 = sadd.s32 1, %s34
      %s44 = scalar_select %p41, %s43, %s34
      %p45 = scmp.ge.s32.totalorder %s44, 4
      %s46 = scalar_select %p45, 0, %s44
      %s47 = ssub.s32 %s34, %s46
      %s48 = ssub.s32 %s35, %s42
      %s49 = sor.u32 %s47, %s48
      %p50 = scmp.eq.s32.totalorder %s49, 0
      %s52 = sadd.s32 %s51, 1
      %s53 = scalar_select %p50, %s51, %s52
      %p56 = pneg %p50
      %p57 = scmp.eq.s32.totalorder %s27, 3
      %p58 = por %p56, %p57
      %p59 = scmp.ne.s32.totalorder %s51, %s54
      %p60 = scmp.eq.s32.totalorder %s27, 0
      %p61 = por %p59, %p60
      %p62 = scmp.ne.s32.totalorder %s51, %s54
      %p63 = scmp.eq.s32.totalorder %s32, 3
      %p64 = por %p62, %p63
      %p65 = scmp.ne.s32.totalorder %s54, %s55
      %p66 = scmp.eq.s32.totalorder %s32, 0
      %p67 = por %p65, %p66
      %p68 = scmp.ne.s32.totalorder %s54, %s55
      %p69 = scmp.eq.s32.totalorder %s33, 3
      %p70 = por %p68, %p69
      %p72 = scmp.ne.s32.totalorder %s55, %s71
      %p73 = scmp.eq.s32.totalorder %s33, 0
      %p74 = por %p72, %p73
      %s75 = ssub.s32 %s34, %s46
      %s76 = ssub.s32 %s35, %s42
      %s77 = sor.u32 %s75, %s76
      %p78 = scmp.eq.s32.totalorder %s77, 0
      %s80 = sadd.s32 %s79, 1
      %s81 = scalar_select %p78, %s79, %s80
      %p84 = pneg %p78
      %p85 = scmp.eq.s32.totalorder %s27, 3
      %p86 = por %p84, %p85
      %p87 = scmp.ne.s32.totalorder %s79, %s82
      %p88 = scmp.eq.s32.totalorder %s27, 0
      %p89 = por %p87, %p88
      %p90 = scmp.ne.s32.totalorder %s79, %s82
      %p91 = scmp.eq.s32.totalorder %s32, 3
      %p92 = por %p90, %p91
      %p93 = scmp.ne.s32.totalorder %s82, %s83
      %p94 = scmp.eq.s32.totalorder %s32, 0
      %p95 = por %p93, %p94
      %p96 = scmp.ne.s32.totalorder %s82, %s83
      %p97 = scmp.eq.s32.totalorder %s33, 3
      %p98 = por %p96, %p97
      %p100 = scmp.ne.s32.totalorder %s83, %s99
      %p101 = scmp.eq.s32.totalorder %s33, 0
      %p102 = por %p100, %p101
      %s103 = ssub.s32 %s34, %s46
      %p104 = scmp.eq.s32.totalorder %s103, 0
      %s106 = sadd.s32 %s105, 1
      %s107 = scalar_select %p104, %s105, %s106
      %p110 = pneg %p104
      %p111 = scmp.eq.s32.totalorder %s27, 3
      %p112 = por %p110, %p111
      %p113 = scmp.ne.s32.totalorder %s105, %s108
      %p114 = scmp.eq.s32.totalorder %s27, 0
      %p115 = por %p113, %p114
      %p116 = scmp.ne.s32.totalorder %s105, %s108
      %p117 = scmp.eq.s32.totalorder %s32, 3
      %p118 = por %p116, %p117
      %p119 = scmp.ne.s32.totalorder %s108, %s109
      %p120 = scmp.eq.s32.totalorder %s32, 0
      %p121 = por %p119, %p120
      %p122 = scmp.ne.s32.totalorder %s108, %s109
      %p123 = scmp.eq.s32.totalorder %s33, 3
      %p124 = por %p122, %p123
      %p126 = scmp.ne.s32.totalorder %s109, %s125
      %p127 = scmp.eq.s32.totalorder %s33, 0
      %p128 = por %p126, %p127
      %s129 = ssub.s32 %s34, %s46
      %p130 = scmp.eq.s32.totalorder %s129, 0
      %s132 = sadd.s32 %s131, 1
      %s133 = scalar_select %p130, %s131, %s132
      %p136 = pneg %p130
      %p137 = scmp.eq.s32.totalorder %s27, 3
      %p138 = por %p136, %p137
      %p139 = scmp.ne.s32.totalorder %s131, %s134
      %p140 = scmp.eq.s32.totalorder %s27, 0
      %p141 = por %p139, %p140
      %p142 = scmp.ne.s32.totalorder %s131, %s134
      %p143 = scmp.eq.s32.totalorder %s32, 3
      %p144 = por %p142, %p143
      %p145 = scmp.ne.s32.totalorder %s134, %s135
      %p146 = scmp.eq.s32.totalorder %s32, 0
      %p147 = por %p145, %p146
      %p148 = scmp.ne.s32.totalorder %s134, %s135
      %p149 = scmp.eq.s32.totalorder %s33, 3
      %p150 = por %p148, %p149
      %p152 = scmp.ne.s32.totalorder %s135, %s151
      %p153 = scmp.eq.s32.totalorder %s33, 0
      %p154 = por %p152, %p153
      %s155 = ssub.s32 %s34, %s46
      %s156 = ssub.s32 %s35, %s42
      %s157 = sor.u32 %s155, %s156
      %p158 = scmp.eq.s32.totalorder %s157, 0
      %s160 = sadd.s32 %s159, 1
      %s161 = scalar_select %p158, %s159, %s160
      %p164 = pneg %p158
      %p165 = scmp.eq.s32.totalorder %s27, 3
      %p166 = por %p164, %p165
      %p167 = scmp.ne.s32.totalorder %s159, %s162
      %p168 = scmp.eq.s32.totalorder %s27, 0
      %p169 = por %p167, %p168
      %p170 = scmp.ne.s32.totalorder %s159, %s162
      %p171 = scmp.eq.s32.totalorder %s32, 3
      %p172 = por %p170, %p171
      %p173 = scmp.ne.s32.totalorder %s162, %s163
      %p174 = scmp.eq.s32.totalorder %s32, 0
      %p175 = por %p173, %p174
      %p176 = scmp.ne.s32.totalorder %s162, %s163
      %p177 = scmp.eq.s32.totalorder %s33, 3
      %p178 = por %p176, %p177
      %p180 = scmp.ne.s32.totalorder %s163, %s179
      %p181 = scmp.eq.s32.totalorder %s33, 0
      %p182 = por %p180, %p181
      %s183 = ssub.s32 %s34, %s46
      %s184 = ssub.s32 %s35, %s42
      %s185 = sor.u32 %s183, %s184
      %p186 = scmp.eq.s32.totalorder %s185, 0
      %s188 = sadd.s32 %s187, 1
      %s189 = scalar_select %p186, %s187, %s188
      %p192 = pneg %p186
      %p193 = scmp.eq.s32.totalorder %s27, 3
      %p194 = por %p192, %p193
      %p195 = scmp.ne.s32.totalorder %s187, %s190
      %p196 = scmp.eq.s32.totalorder %s27, 0
      %p197 = por %p195, %p196
      %p198 = scmp.ne.s32.totalorder %s187, %s190
      %p199 = scmp.eq.s32.totalorder %s32, 3
      %p200 = por %p198, %p199
      %p201 = scmp.ne.s32.totalorder %s190, %s191
      %p202 = scmp.eq.s32.totalorder %s32, 0
      %p203 = por %p201, %p202
      %p204 = scmp.ne.s32.totalorder %s190, %s191
      %p205 = scmp.eq.s32.totalorder %s33, 3
      %p206 = por %p204, %p205
      %p208 = scmp.ne.s32.totalorder %s191, %s207
      %p209 = scmp.eq.s32.totalorder %s33, 0
      %p210 = por %p208, %p209
      %p211 = scmp.le.s32.totalorder 1, %s27
      %p212 = scmp.lt.s32.totalorder %s27, 5
      %p213 = pnand %p211, %p212
      %p214 = pneg %p213
      // Predicated region
      $region9: #{tpu_custom_call.1} parent=5 // pred_check
        _
      $region10: #{tpu_custom_call.1} parent=5 // pred_check_branch
        %216 = sbr.rel (%p213) target = $region12
      $region11: #{tpu_custom_call.1} parent=5 // pred_region
        %s217 = ssub.s32 %s27, 1
      $region12: #{tpu_custom_call.1} parent=5 // pred_fallthru
        _
      %p218 = scmp.lt.s32.totalorder %s27, 4
      // Predicated region
      $region13: #{tpu_custom_call.1} parent=5 // pred_check
        %p219 = pneg %p218
      $region14: #{tpu_custom_call.1} parent=5 // pred_check_branch
        %221 = sbr.rel (%p219) target = $region16
      $region15: #{tpu_custom_call.1} parent=5 // pred_region
        // Predicated region
        $region17: #{tpu_custom_call.1} parent=15 // pred_check
          %p222 = pneg %p61
        $region18: #{tpu_custom_call.1} parent=15 // pred_check_branch
          %224 = sbr.rel (%p222) target = $region20
        $region19: #{tpu_custom_call.1} parent=15 // pred_region
          %s225 = sand.u32 %s51, 1
          %s226 = scalar_lea.sflag [#allocation3], %s225
          %s227 = sand.u32 %s51, 1
          %s228 = smul.addr %s227, 8
          %s229 = scalar_lea.vmem [#allocation2], %s228
          %s231 = ssub.s32 128, 128
          %232 = vsyncadd %s226, %s231
          %s233 = sadd.s32 %s35, %s34
          %s234 = smul.addr %s233, 128
          %s235 = scalar_lea.hbm %s0, %s234
          %s237 = sshll.u32 %s229, 4
          %s238 = int_to_ptr.vmem [resolvable:$true] %s237
          %240 = dma.hbm_to_vmem [thread:$0]  %s235, 128, %s238, %s226
        $region20: #{tpu_custom_call.1} parent=15 // pred_fallthru
          _
        // Predicated region
        $region21: #{tpu_custom_call.1} parent=15 // pred_check
          %p241 = pneg %p89
        $region22: #{tpu_custom_call.1} parent=15 // pred_check_branch
          %243 = sbr.rel (%p241) target = $region24
        $region23: #{tpu_custom_call.1} parent=15 // pred_region
          %s244 = sand.u32 %s27, 1
          %s245 = scalar_lea.sflag [#allocation6], %s244
          %s246 = sand.u32 %s79, 1
          %s247 = smul.addr %s246, 8
          %s248 = scalar_lea.vmem [#allocation5], %s247
          %s250 = ssub.s32 128, 128
          %251 = vsyncadd %s245, %s250
          %s252 = sadd.s32 %s35, %s34
          %s253 = smul.addr %s252, 128
          %s254 = scalar_lea.hbm %s1, %s253
          %s256 = sshll.u32 %s248, 4
          %s257 = int_to_ptr.vmem [resolvable:$true] %s256
          %259 = dma.hbm_to_vmem [thread:$0]  %s254, 128, %s257, %s245
        $region24: #{tpu_custom_call.1} parent=15 // pred_fallthru
          _
        // Predicated region
        $region25: #{tpu_custom_call.1} parent=15 // pred_check
          %p260 = pneg %p115
        $region26: #{tpu_custom_call.1} parent=15 // pred_check_branch
          %262 = sbr.rel (%p260) target = $region28
        $region27: #{tpu_custom_call.1} parent=15 // pred_region
          %s263 = sand.u32 %s27, 1
          %s264 = scalar_lea.sflag [#allocation6], %s263
          %s265 = sand.u32 %s105, 1
          %s266 = smul.addr %s265, 16
          %s267 = scalar_lea.vmem [#allocation7], %s266
          %s269 = ssub.s32 256, 256
          %270 = vsyncadd %s264, %s269
          %s271 = smul.addr %s34, 2
          %s272 = smul.addr %s271, 128
          %s273 = scalar_lea.hbm %s2, %s272
          %s274 = sshll.u32 %s267, 4
          %s275 = int_to_ptr.vmem [resolvable:$true] %s274
          %280 = dma.hbm_to_vmem [thread:$0]  %s273, 256, %s275, %s264, 128, 128, 8
        $region28: #{tpu_custom_call.1} parent=15 // pred_fallthru
          _
        // Predicated region
        $region29: #{tpu_custom_call.1} parent=15 // pred_check
          %p281 = pneg %p141
        $region30: #{tpu_custom_call.1} parent=15 // pred_check_branch
          %283 = sbr.rel (%p281) target = $region32
        $region31: #{tpu_custom_call.1} parent=15 // pred_region
          %s284 = sand.u32 %s131, 1
          %s285 = scalar_lea.sflag [#allocation9], %s284
          %s286 = sand.u32 %s131, 1
          %s287 = smul.addr %s286, 8
          %s288 = scalar_lea.vmem [#allocation8], %s287
          %s290 = ssub.s32 128, 128
          %291 = vsyncadd %s285, %s290
          %s292 = smul.addr %s34, 128
          %s293 = scalar_lea.hbm %s3, %s292
          %s295 = sshll.u32 %s288, 4
          %s296 = int_to_ptr.vmem [resolvable:$true] %s295
          %298 = dma.hbm_to_vmem [thread:$0]  %s293, 128, %s296, %s285
        $region32: #{tpu_custom_call.1} parent=15 // pred_fallthru
          _
      $region16: #{tpu_custom_call.1} parent=5 // pred_fallthru
        _
      %p299 = scmp.le.s32.totalorder 1, %s27
      %p300 = scmp.lt.s32.totalorder %s27, 5
      %p301 = pnand %p299, %p300
      %p302 = pneg %p301
      // Predicated region
      $region33: #{tpu_custom_call.1} parent=5 // pred_check
        _
      $region34: #{tpu_custom_call.1} parent=5 // pred_check_branch
        %304 = sbr.rel (%p301) target = $region36
      $region35: #{tpu_custom_call.1} parent=5 // pred_region
        %s305 = ssub.s32 %s27, 1
        %s306 = sand.u32 %s54, 1
        %s307 = scalar_lea.sflag [#allocation3], %s306
        %s308 = sand.u32 %s54, 1
        %s309 = smul.addr %s308, 8
        %s310 = scalar_lea.vmem [#allocation2], %s309
        // Predicated region
        $region37: #{tpu_custom_call.1} parent=35 // pred_check
          %p311 = pneg %p67
        $region38: #{tpu_custom_call.1} parent=35 // pred_check_branch
          %313 = sbr.rel (%p311) target = $region40
        $region39: #{tpu_custom_call.1} parent=35 // pred_region
          %314 = dma.done %s307, 128
        $region40: #{tpu_custom_call.1} parent=35 // pred_fallthru
          _
        %s315 = sand.u32 %s32, 1
        %s316 = scalar_lea.sflag [#allocation6], %s315
        %s317 = sand.u32 %s82, 1
        %s318 = smul.addr %s317, 8
        %s319 = scalar_lea.vmem [#allocation5], %s318
        // Predicated region
        $region41: #{tpu_custom_call.1} parent=35 // pred_check
          %p320 = pneg %p95
        $region42: #{tpu_custom_call.1} parent=35 // pred_check_branch
          %322 = sbr.rel (%p320) target = $region44
        $region43: #{tpu_custom_call.1} parent=35 // pred_region
          %323 = dma.done %s316, 128
        $region44: #{tpu_custom_call.1} parent=35 // pred_fallthru
          _
        %s324 = sand.u32 %s32, 1
        %s325 = scalar_lea.sflag [#allocation6], %s324
        %s326 = sand.u32 %s108, 1
        %s327 = smul.addr %s326, 16
        %s328 = scalar_lea.vmem [#allocation7], %s327
        // Predicated region
        $region45: #{tpu_custom_call.1} parent=35 // pred_check
          %p329 = pneg %p121
        $region46: #{tpu_custom_call.1} parent=35 // pred_check_branch
          %331 = sbr.rel (%p329) target = $region48
        $region47: #{tpu_custom_call.1} parent=35 // pred_region
          %332 = dma.done %s325, 256
        $region48: #{tpu_custom_call.1} parent=35 // pred_fallthru
          _
        %s333 = sand.u32 %s134, 1
        %s334 = scalar_lea.sflag [#allocation9], %s333
        %s335 = sand.u32 %s134, 1
        %s336 = smul.addr %s335, 8
        %s337 = scalar_lea.vmem [#allocation8], %s336
        // Predicated region
        $region49: #{tpu_custom_call.1} parent=35 // pred_check
          %p338 = pneg %p147
        $region50: #{tpu_custom_call.1} parent=35 // pred_check_branch
          %340 = sbr.rel (%p338) target = $region52
        $region51: #{tpu_custom_call.1} parent=35 // pred_region
          %341 = dma.done %s334, 128
        $region52: #{tpu_custom_call.1} parent=35 // pred_fallthru
          _
        %s342 = sand.u32 %s54, 1
        %s343 = scalar_lea.sflag [#allocation3], %s342
        %s344 = sand.u32 %s54, 1
        %s345 = smul.addr %s344, 8
        %s346 = scalar_lea.vmem [#allocation2], %s345
        %p347 = pneg %p67
        %p348 = pneg %p64
        %s349 = sand.u32 %s32, 1
        %s350 = scalar_lea.sflag [#allocation6], %s349
        %s351 = sand.u32 %s82, 1
        %s352 = smul.addr %s351, 8
        %s353 = scalar_lea.vmem [#allocation5], %s352
        %p354 = pneg %p95
        %p355 = pneg %p92
        %s356 = sand.u32 %s32, 1
        %s357 = scalar_lea.sflag [#allocation6], %s356
        %s358 = sand.u32 %s108, 1
        %s359 = smul.addr %s358, 16
        %s360 = scalar_lea.vmem [#allocation7], %s359
        %p361 = pneg %p121
        %p362 = pneg %p118
        %s363 = sand.u32 %s134, 1
        %s364 = scalar_lea.sflag [#allocation9], %s363
        %s365 = sand.u32 %s134, 1
        %s366 = smul.addr %s365, 8
        %s367 = scalar_lea.vmem [#allocation8], %s366
        %p368 = pneg %p147
        %p369 = pneg %p144
        %p370 = pneg %p175
        %p371 = pneg %p172
        %s372 = sand.u32 %s162, 1
        %s373 = scalar_lea.sflag [#allocation4], %s372
        %s374 = sand.u32 %s162, 1
        %s375 = smul.addr %s374, 8
        %s376 = scalar_lea.vmem [#allocation10], %s375
        %p377 = pneg %p203
        %p378 = pneg %p200
        %s379 = sand.u32 %s190, 1
        %s380 = scalar_lea.sflag [#allocation12], %s379
        %s381 = sand.u32 %s190, 1
        %s382 = smul.addr %s381, 8
        %s383 = scalar_lea.vmem [#allocation11], %s382
        %v384 = vld [vmem:[%s310] sm:$0xff]
        %v385 = vld [vmem:[%s319] sm:$0xff]
        %v386 = vld [vmem:[%s328] sm:$0xff]
        %v387 = vld [vmem:[%s328 + $0x8] sm:$0xff]
        %vm388 = vcmask 130048
        %v390 = vsel %vm388, %v384, 0
        %v393 = vsel %vm388, %v385, 0
        %v396 = vsel %vm388, %v386, 0
        %v399 = vsel %vm388, %v387, 0
        %401 = vmatprep.subr.mxu0 0.0
        %402 = vmatpush1.xpose.msra.mxu0 0.0
        %403 = vmatprep.subr.mxu0 0.0
        %404 = vmatpush1.xpose.msra.mxu0 0.0
        %405 = vmatprep.subr.mxu0 0.0
        %406 = vmatpush1.xpose.msra.mxu0 0.0
        %407 = vmatprep.subr.mxu0 0.0
        %408 = vmatpush1.xpose.msra.mxu0 0.0
        %409 = vmatprep.subr.mxu0 0.0
        %410 = vmatpush1.xpose.msra.mxu0 0.0
        %411 = vmatprep.subr.mxu0 0.0
        %412 = vmatpush1.xpose.msra.mxu0 0.0
        %413 = vmatprep.subr.mxu0 0.0
        %414 = vmatpush1.xpose.msra.mxu0 0.0
        %415 = vmatprep.subr.mxu0 0.0
        %416 = vmatpush1.xpose.msra.mxu0 0.0
        %417 = vmatprep.subr.mxu0 0.0
        %418 = vmatpush1.xpose.msra.mxu0 0.0
        %419 = vmatprep.subr.mxu0 0.0
        %420 = vmatpush1.xpose.msra.mxu0 0.0
        %421 = vmatprep.subr.mxu0 0.0
        %422 = vmatpush1.xpose.msra.mxu0 0.0
        %423 = vmatprep.subr.mxu0 0.0
        %424 = vmatpush1.xpose.msra.mxu0 0.0
        %425 = vmatprep.subr.mxu0 0.0
        %426 = vmatpush1.xpose.msra.mxu0 0.0
        %427 = vmatprep.subr.mxu0 0.0
        %428 = vmatpush1.xpose.msra.mxu0 0.0
        %429 = vmatprep.subr.mxu0 0.0
        %430 = vmatpush1.xpose.msra.mxu0 %v399
        %431 = vmatprep.subr.mxu0 0.0
        %432 = vmatpush1.xpose.msra.mxu0 %v396
        %433 = vmatprep.subr.mxu0 0.0
        %434 = vmatpush2.xpose.msra.mxu0 0.0
        %435 = vmatprep.subr.mxu0 0.0
        %436 = vmatpush2.xpose.msra.mxu0 0.0
        %437 = vmatprep.subr.mxu0 0.0
        %438 = vmatpush2.xpose.msra.mxu0 0.0
        %439 = vmatprep.subr.mxu0 0.0
        %440 = vmatpush2.xpose.msra.mxu0 0.0
        %441 = vmatprep.subr.mxu0 0.0
        %442 = vmatpush2.xpose.msra.mxu0 0.0
        %443 = vmatprep.subr.mxu0 0.0
        %444 = vmatpush2.xpose.msra.mxu0 0.0
        %445 = vmatprep.subr.mxu0 0.0
        %446 = vmatpush2.xpose.msra.mxu0 0.0
        %447 = vmatprep.subr.mxu0 0.0
        %448 = vmatpush2.xpose.msra.mxu0 0.0
        %449 = vmatprep.subr.mxu0 0.0
        %450 = vmatpush2.xpose.msra.mxu0 0.0
        %451 = vmatprep.subr.mxu0 0.0
        %452 = vmatpush2.xpose.msra.mxu0 0.0
        %453 = vmatprep.subr.mxu0 0.0
        %454 = vmatpush2.xpose.msra.mxu0 0.0
        %455 = vmatprep.subr.mxu0 0.0
        %456 = vmatpush2.xpose.msra.mxu0 0.0
        %457 = vmatprep.subr.mxu0 0.0
        %458 = vmatpush2.xpose.msra.mxu0 0.0
        %459 = vmatprep.subr.mxu0 0.0
        %460 = vmatpush2.xpose.msra.mxu0 0.0
        %461 = vmatprep.subr.mxu0 0.0
        %462 = vmatpush2.xpose.msra.mxu0 0.0
        %463 = vmatprep.subr.mxu0 0.0
        %464 = vmatpush2.xpose.msra.mxu0 0.0
        %465 = vmatprep.mubr.f32.mxu0 0.0
        %466 = vmatmul.mubr.f32.gmra.mxu0 %v390
        %v467 = vpop.f32.mrf.mxu0
        %v468 = vadd.f32 0.0, %v467
        %v469 = vpop.f32.mrf.mxu0
        %470 = vmatprep.mubr.f32.mxu0 0.0
        %471 = vmatmul.mubr.f32.gmra.mxu0 %v393
        %v472 = vpop.f32.mrf.mxu0
        %v473 = vadd.f32 0.0, %v472
        %v474 = vpop.f32.mrf.mxu0
        %475 = vdwg.mxu0
        %477 = vrot.lane.b32.xlu0 %v473, 120
        %v478 = vpop.permute.xlu0 %477
        %v480 = vsub.f32 %v468, %v478
        %481 = vrot.lane.b32.xlu0 %v473, 8
        %v482 = vpop.permute.xlu0 %481
        %v484 = vadd.f32 %v468, %v482
        %486 = vrot.lane.b32.xlu0 %v484, 120
        %v487 = vpop.permute.xlu0 %486
        %v489 = vrcp.pop 5.656854
        %v490 = vmul.f32 %v480, %v489
        %v491 = vmul.f32 %v487, %v489
        %vm492 = vcmask 64512
        %v493 = vsel %vm492, %v490, -inf
        %494 = vmax.xlane.f32.xlu0 %v493
        %v495 = vpop.xlane.xlu0 %494
        %v496 = vsel %vm492, %v491, -inf
        %497 = vmax.xlane.f32.xlu0 %v496
        %v498 = vpop.xlane.xlu0 %497
        %v499 = vsub.f32 %v490, %v495
        %v500 = vsub.f32 %v491, %v498
        %v501 = vmul.f32 %v499, 1.442695
        %v502 = vpow.pop %v501
        %v503 = vmul.f32 %v500, 1.442695
        %v504 = vpow.pop %v503
        %v505 = vsel %vm492, %v502, 0.0
        %506 = vadd.xlane.f32.xlu0 %v505
        %v507 = vpop.xlane.xlu0 %506
        %v508 = vsel %vm492, %v504, 0.0
        %509 = vadd.xlane.f32.xlu0 %v508
        %v510 = vpop.xlane.xlu0 %509
        %v511 = vrcp.pop %v507
        %v512 = vmul.f32 %v502, %v511
        %v513 = vrcp.pop %v510
        %v514 = vmul.f32 %v504, %v513
        %v515 = vld [vmem:[%s337] sm:$0xff]
        %v517 = vsel %vm492, %v512, 0
        %v520 = vsel %vm492, %v514, 0
        %522 = vmatprep.subr.mxu0 0.0
        %523 = vmatpush1.msra.mxu0 0.0
        %524 = vmatprep.subr.mxu0 0.0
        %525 = vmatpush1.msra.mxu0 0.0
        %526 = vmatprep.subr.mxu0 0.0
        %527 = vmatpush1.msra.mxu0 0.0
        %528 = vmatprep.subr.mxu0 0.0
        %529 = vmatpush1.msra.mxu0 0.0
        %530 = vmatprep.subr.mxu0 0.0
        %531 = vmatpush1.msra.mxu0 0.0
        %532 = vmatprep.subr.mxu0 0.0
        %533 = vmatpush1.msra.mxu0 0.0
        %534 = vmatprep.subr.mxu0 0.0
        %535 = vmatpush1.msra.mxu0 0.0
        %536 = vmatprep.subr.mxu0 0.0
        %537 = vmatpush1.msra.mxu0 0.0
        %538 = vmatprep.subr.mxu0 0.0
        %539 = vmatpush1.msra.mxu0 0.0
        %540 = vmatprep.subr.mxu0 0.0
        %541 = vmatpush1.msra.mxu0 0.0
        %542 = vmatprep.subr.mxu0 0.0
        %543 = vmatpush1.msra.mxu0 0.0
        %544 = vmatprep.subr.mxu0 0.0
        %545 = vmatpush1.msra.mxu0 0.0
        %546 = vmatprep.subr.mxu0 0.0
        %547 = vmatpush1.msra.mxu0 0.0
        %548 = vmatprep.subr.mxu0 0.0
        %549 = vmatpush1.msra.mxu0 0.0
        %550 = vmatprep.subr.mxu0 0.0
        %551 = vmatpush1.msra.mxu0 0.0
        %552 = vmatprep.subr.mxu0 0.0
        %553 = vmatpush1.msra.mxu0 %v515
        %554 = vmatprep.subr.mxu0 0.0
        %555 = vmatpush2.msra.mxu0 0.0
        %556 = vmatprep.subr.mxu0 0.0
        %557 = vmatpush2.msra.mxu0 0.0
        %558 = vmatprep.subr.mxu0 0.0
        %559 = vmatpush2.msra.mxu0 0.0
        %560 = vmatprep.subr.mxu0 0.0
        %561 = vmatpush2.msra.mxu0 0.0
        %562 = vmatprep.subr.mxu0 0.0
        %563 = vmatpush2.msra.mxu0 0.0
        %564 = vmatprep.subr.mxu0 0.0
        %565 = vmatpush2.msra.mxu0 0.0
        %566 = vmatprep.subr.mxu0 0.0
        %567 = vmatpush2.msra.mxu0 0.0
        %568 = vmatprep.subr.mxu0 0.0
        %569 = vmatpush2.msra.mxu0 0.0
        %570 = vmatprep.subr.mxu0 0.0
        %571 = vmatpush2.msra.mxu0 0.0
        %572 = vmatprep.subr.mxu0 0.0
        %573 = vmatpush2.msra.mxu0 0.0
        %574 = vmatprep.subr.mxu0 0.0
        %575 = vmatpush2.msra.mxu0 0.0
        %576 = vmatprep.subr.mxu0 0.0
        %577 = vmatpush2.msra.mxu0 0.0
        %578 = vmatprep.subr.mxu0 0.0
        %579 = vmatpush2.msra.mxu0 0.0
        %580 = vmatprep.subr.mxu0 0.0
        %581 = vmatpush2.msra.mxu0 0.0
        %582 = vmatprep.subr.mxu0 0.0
        %583 = vmatpush2.msra.mxu0 0.0
        %584 = vmatprep.subr.mxu0 0.0
        %585 = vmatpush2.msra.mxu0 0.0
        %586 = vmatprep.mubr.f32.mxu0 0.0
        %587 = vmatmul.mubr.f32.gmra.mxu0 %v517
        %v588 = vpop.f32.mrf.mxu0
        %v589 = vadd.f32 0.0, %v588
        %v590 = vpop.f32.mrf.mxu0
        %591 = vmatprep.mubr.f32.mxu0 0.0
        %592 = vmatmul.mubr.f32.gmra.mxu0 %v520
        %v593 = vpop.f32.mrf.mxu0
        %v594 = vadd.f32 0.0, %v593
        %v595 = vpop.f32.mrf.mxu0
        %596 = vdwg.mxu0
        %598 = vrot.lane.b32.xlu0 %v594, 112
        %v599 = vpop.permute.xlu0 %598
        %v601 = vsub.f32 %v589, %v599
        %602 = vrot.lane.b32.xlu0 %v594, 16
        %v603 = vpop.permute.xlu0 %602
        %v605 = vadd.f32 %v589, %v603
        %v606 = vsel %vm388, %v601, %v605
        %vm607 = vcmask 261120
        %608 = vst.msk [vmem:[%s376] sm:$0xff] %vm607, %v606
        %609 = vst.msk [vmem:[%s383] sm:$0xff] %vm492, %v512
        %s610 = sand.u32 %s162, 1
        %s611 = scalar_lea.sflag [#allocation4], %s610
        %s612 = sand.u32 %s162, 1
        %s613 = smul.addr %s612, 8
        %s614 = scalar_lea.vmem [#allocation10], %s613
        %s615 = sand.u32 %s190, 1
        %s616 = scalar_lea.sflag [#allocation12], %s615
        %s617 = sand.u32 %s190, 1
        %s618 = smul.addr %s617, 8
        %s619 = scalar_lea.vmem [#allocation11], %s618
        // Predicated region
        $region53: #{tpu_custom_call.1} parent=35 // pred_check
          %p620 = pneg %p172
        $region54: #{tpu_custom_call.1} parent=35 // pred_check_branch
          %622 = sbr.rel (%p620) target = $region56
        $region55: #{tpu_custom_call.1} parent=35 // pred_region
          %s624 = ssub.s32 128, 128
          %625 = vsyncadd %s611, %s624
          %s626 = sadd.s32 %s37, %s36
          %s627 = smul.addr %s626, 128
          %s628 = scalar_lea.hbm %s4, %s627
          %s630 = sshll.u32 %s614, 4
          %s631 = int_to_ptr.vmem [resolvable:$true] %s630
          %633 = dma.vmem_to_hbm [thread:$0]  %s631, 128, %s628, %s611
        $region56: #{tpu_custom_call.1} parent=35 // pred_fallthru
          _
        // Predicated region
        $region57: #{tpu_custom_call.1} parent=35 // pred_check
          %p634 = pneg %p200
        $region58: #{tpu_custom_call.1} parent=35 // pred_check_branch
          %636 = sbr.rel (%p634) target = $region60
        $region59: #{tpu_custom_call.1} parent=35 // pred_region
          %s638 = ssub.s32 128, 128
          %639 = vsyncadd %s616, %s638
          %s640 = sadd.s32 %s37, %s36
          %s641 = smul.addr %s640, 128
          %s642 = scalar_lea.hbm %s5, %s641
          %s644 = sshll.u32 %s619, 4
          %s645 = int_to_ptr.vmem [resolvable:$true] %s644
          %647 = dma.vmem_to_hbm [thread:$0]  %s645, 128, %s642, %s616
        $region60: #{tpu_custom_call.1} parent=35 // pred_fallthru
          _
      $region36: #{tpu_custom_call.1} parent=5 // pred_fallthru
        _
      %p648 = scmp.le.s32.totalorder 2, %s27
      // Predicated region
      $region61: #{tpu_custom_call.1} parent=5 // pred_check
        %p649 = pneg %p648
      $region62: #{tpu_custom_call.1} parent=5 // pred_check_branch
        %651 = sbr.rel (%p649) target = $region64
      $region63: #{tpu_custom_call.1} parent=5 // pred_region
        %s652 = ssub.s32 %s27, 2
        // Predicated region
        $region65: #{tpu_custom_call.1} parent=63 // pred_check
          %p653 = pneg %p178
        $region66: #{tpu_custom_call.1} parent=63 // pred_check_branch
          %655 = sbr.rel (%p653) target = $region68
        $region67: #{tpu_custom_call.1} parent=63 // pred_region
          %s656 = sand.u32 %s163, 1
          %s657 = scalar_lea.sflag [#allocation4], %s656
          %s658 = sand.u32 %s163, 1
          %s659 = smul.addr %s658, 8
          %s660 = scalar_lea.vmem [#allocation10], %s659
          %661 = dma.done %s657, 128
        $region68: #{tpu_custom_call.1} parent=63 // pred_fallthru
          _
        // Predicated region
        $region69: #{tpu_custom_call.1} parent=63 // pred_check
          %p662 = pneg %p206
        $region70: #{tpu_custom_call.1} parent=63 // pred_check_branch
          %664 = sbr.rel (%p662) target = $region72
        $region71: #{tpu_custom_call.1} parent=63 // pred_region
          %s665 = sand.u32 %s191, 1
          %s666 = scalar_lea.sflag [#allocation12], %s665
          %s667 = sand.u32 %s191, 1
          %s668 = smul.addr %s667, 8
          %s669 = scalar_lea.vmem [#allocation11], %s668
          %670 = dma.done %s666, 128
        $region72: #{tpu_custom_call.1} parent=63 // pred_fallthru
          _
      $region64: #{tpu_custom_call.1} parent=5 // pred_fallthru
        _
    $region6: #{tpu_custom_call.1} parent=1 // loop_footer
      %s31 = sadd.s32 1, %s27
    $region7: #{tpu_custom_call.1} parent=1 // loop_footer_branch
      %26 = sbr.rel target = $region3
    $region8: #{tpu_custom_call.1} parent=1 // loop_exit
      _
    %671 = vsyncpa [#allocation3], 1
    %s672 = scalar_lea.sflag [#allocation3], 1
    %673 = vsyncpa %s672, 1
    %674 = vsyncpa [#allocation6], 1
    %s675 = scalar_lea.sflag [#allocation6], 1
    %676 = vsyncpa %s675, 1
    %677 = vsyncpa [#allocation9], 1
    %s678 = scalar_lea.sflag [#allocation9], 1
    %679 = vsyncpa %s678, 1
    %680 = vsyncpa [#allocation4], 1
    %s681 = scalar_lea.sflag [#allocation4], 1
    %682 = vsyncpa %s681, 1
    %683 = vsyncpa [#allocation12], 1
    %s684 = scalar_lea.sflag [#allocation12], 1
    %685 = vsyncpa %s684, 1

</llo_original>
